<compile_context>
chip_gen: v7x
topology: tpu7x:2x2x1
jax: 0.10.0
libtpu: 0.0.40
codegen_flags: <defaults>
</compile_context>

<pallas_src>
import functools

import jax
import jax.numpy as jnp
from jax.experimental import pallas as pl
from jax.experimental.pallas import tpu as pltpu

F_IN = 18           # nn.Linear(18, n_hidden)
N_HIDDEN = 32       # trial.suggest_int('n_hidden', 18, 36, step=2) -> fixed to 32 here
LANE = 128          # TPU lane width; batch tiles are multiples of this
DEFAULT_BLOCK_B = 8192


def _round_up(n, m):
    return ((n + m - 1) // m) * m


def netopt_kernel(x_ref, w1_ref, b1_ref, w2_ref, b2_ref, w3_ref, b3_ref, o_ref):
    """Fused 3-layer MLP in feature-major layout: y = W3 @ relu(W2 @ relu(W1 @ x + b1) + b2) + b3."""
    x = x_ref[...]                                                      # [F, bB] bf16
    h1 = jnp.dot(w1_ref[...], x, preferred_element_type=jnp.float32)   # [H, bB] f32 (MXU)
    h1 = jnp.maximum(h1 + b1_ref[...], 0.0)                            # bias [H,1] lane-bcast
    # Dropout(p) is identity in eval mode -> no-op.
    h2 = jnp.dot(w2_ref[...], h1.astype(jnp.bfloat16),
                 preferred_element_type=jnp.float32)                    # [H, bB] f32
    h2 = jnp.maximum(h2 + b2_ref[...], 0.0)
    y = jnp.dot(w3_ref[...], h2.astype(jnp.bfloat16),
                preferred_element_type=jnp.float32)                     # [1, bB] f32
    o_ref[...] = y + b3_ref[...]                                        # lane-dense store


@functools.partial(jax.jit, static_argnames=("block_b",))
def netopt_forward(x, w1, b1, w2, b2, w3, b3, block_b=DEFAULT_BLOCK_B):
    """x: [B, F] f32; weights/biases in PyTorch-native layout (W [out, in], b [out]).

    Returns y: [B, 1] f32, matching PyTorch Netopt.forward in eval mode.
    """
    B, f_in = x.shape
    h = w1.shape[0]

    # 128-aligned batch tile; a small batch becomes a single tile (bounds padding waste).
    block_b = min(block_b, _round_up(B, LANE))
    b_pad = _round_up(B, block_b)
    grid = (b_pad // block_b,)

    # Feature-major, lane-dense batch axis; transpose + cast + zero-pad fuse into one pass.
    x_fm = jnp.pad(x.T.astype(jnp.bfloat16), ((0, 0), (0, b_pad - B)))  # [F, b_pad] bf16

    # Weights as bf16 MXU operands; biases kept f32 as [out, 1] columns for lane-broadcast.
    w1b = w1.astype(jnp.bfloat16)                    # [H, F]
    w2b = w2.astype(jnp.bfloat16)                    # [H, H]
    w3b = w3.astype(jnp.bfloat16)                    # [1, H]
    b1c = b1.reshape(h, 1).astype(jnp.float32)
    b2c = b2.reshape(h, 1).astype(jnp.float32)
    b3c = b3.reshape(1, 1).astype(jnp.float32)

    flops = 2 * b_pad * (f_in * h + h * h + h)
    bytes_accessed = (f_in * b_pad * 2                         # x (bf16)
                      + b_pad * 4                              # output (f32)
                      + (h * f_in + h * h + h) * 2             # weights (bf16)
                      + (2 * h + 1) * 4)                       # biases (f32)

    y_pad = pl.pallas_call(
        netopt_kernel,
        out_shape=jax.ShapeDtypeStruct((1, b_pad), jnp.float32),
        grid=grid,
        in_specs=[
            # x: tiled along the (lane) batch axis.
            pl.BlockSpec((f_in, block_b), lambda i: (0, i)),
            # Weights / biases: whole-array, constant index_map -> DMA'd once, VMEM-resident.
            pl.BlockSpec((h, f_in), lambda i: (0, 0)),
            pl.BlockSpec((h, 1), lambda i: (0, 0)),
            pl.BlockSpec((h, h), lambda i: (0, 0)),
            pl.BlockSpec((h, 1), lambda i: (0, 0)),
            pl.BlockSpec((1, h), lambda i: (0, 0)),
            pl.BlockSpec((1, 1), lambda i: (0, 0)),
        ],
        out_specs=pl.BlockSpec((1, block_b), lambda i: (0, i)),
        compiler_params=pltpu.CompilerParams(
            dimension_semantics=("parallel",)),
        cost_estimate=pl.CostEstimate(
            flops=flops, transcendentals=0, bytes_accessed=bytes_accessed),
    )(x_fm, w1b, b1c, w2b, b2c, w3b, b3c)

    # Back to PyTorch output layout [B, 1], dropping padded batch columns.
    return y_pad[0, :B].reshape(B, 1)


def init_linear_params(key, fan_in, fan_out):
    """PyTorch nn.Linear default init, native layout: W [out, in], b [out]."""
    kw, kb = jax.random.split(key)
    bound = 1.0 / jnp.sqrt(jnp.float32(fan_in))
    w = jax.random.uniform(kw, (fan_out, fan_in), jnp.float32, -bound, bound)
    b = jax.random.uniform(kb, (fan_out,), jnp.float32, -bound, bound)
    return w, b


if __name__ == "__main__":
    key = jax.random.PRNGKey(0)
    k_x, k1, k2, k3 = jax.random.split(key, 4)

    B = 8
    x = jax.random.normal(k_x, (B, F_IN), jnp.float32)

    w1, b1 = init_linear_params(k1, F_IN, N_HIDDEN)       # Linear(18, H)
    w2, b2 = init_linear_params(k2, N_HIDDEN, N_HIDDEN)   # Linear(H, H)
    w3, b3 = init_linear_params(k3, N_HIDDEN, 1)          # Linear(H, 1)

    y = netopt_forward(x, w1, b1, w2, b2, w3, b3)
    jax.block_until_ready(y)
    assert y.shape == (B, 1)

    # Reference with matching bf16 matmul inputs / f32 accumulation (kernel-equivalent math).
    xb = x.astype(jnp.bfloat16)
    h1 = jnp.maximum(jnp.dot(xb, w1.T.astype(jnp.bfloat16),
                             preferred_element_type=jnp.float32) + b1, 0.0)
    h2 = jnp.maximum(jnp.dot(h1.astype(jnp.bfloat16), w2.T.astype(jnp.bfloat16),
                             preferred_element_type=jnp.float32) + b2, 0.0)
    y_bf16_ref = jnp.dot(h2.astype(jnp.bfloat16), w3.T.astype(jnp.bfloat16),
                         preferred_element_type=jnp.float32) + b3
    assert jnp.allclose(y, y_bf16_ref, atol=2e-3, rtol=2e-3)

    # Pure-f32 PyTorch-semantics sanity check (looser tolerance due to bf16 MXU operands).
    h1f = jnp.maximum(x @ w1.T + b1, 0.0)
    h2f = jnp.maximum(h1f @ w2.T + b2, 0.0)
    y_f32_ref = h2f @ w3.T + b3
    assert jnp.allclose(y, y_f32_ref, atol=1e-1, rtol=1e-1)

    print("KERNEL_OK")
</pallas_src>

<mosaic_0001>
module attributes {stable_mosaic.version = 11 : i64} {
  func.func @netopt_kernel(%arg0: i32, %arg1: memref<18x128xbf16, #tpu.memory_space<vmem>>, %arg2: memref<32x18xbf16, #tpu.memory_space<vmem>>, %arg3: memref<32x1xf32, #tpu.memory_space<vmem>>, %arg4: memref<32x32xbf16, #tpu.memory_space<vmem>>, %arg5: memref<32x1xf32, #tpu.memory_space<vmem>>, %arg6: memref<1x32xbf16, #tpu.memory_space<vmem>>, %arg7: memref<1x1xf32, #tpu.memory_space<vmem>>, %arg8: memref<1x128xf32, #tpu.memory_space<vmem>>) attributes {dimension_semantics = [#tpu.dimension_semantics<parallel>], iteration_bounds = array<i64: 1>, scalar_prefetch = 0 : i64, scratch_operands = 0 : i64, tpu.core_type = #tpu.core_type<tc>, window_params = [{transform_indices = @transform_0, window_bounds = array<i64: 18, 128>}, {pipeline_mode = #tpu.pipeline_mode<synchronous>, transform_indices = @transform_1, window_bounds = array<i64: 32, 18>}, {pipeline_mode = #tpu.pipeline_mode<synchronous>, transform_indices = @transform_2, window_bounds = array<i64: 32, 1>}, {pipeline_mode = #tpu.pipeline_mode<synchronous>, transform_indices = @transform_3, window_bounds = array<i64: 32, 32>}, {pipeline_mode = #tpu.pipeline_mode<synchronous>, transform_indices = @transform_4, window_bounds = array<i64: 32, 1>}, {pipeline_mode = #tpu.pipeline_mode<synchronous>, transform_indices = @transform_5, window_bounds = array<i64: 1, 32>}, {pipeline_mode = #tpu.pipeline_mode<synchronous>, transform_indices = @transform_6, window_bounds = array<i64: 1, 1>}, {transform_indices = @transform_7, window_bounds = array<i64: 1, 128>}]} {
    %c0 = arith.constant 0 : index
    %c0_0 = arith.constant 0 : index
    %0 = vector.load %arg1[%c0, %c0_0] : memref<18x128xbf16, #tpu.memory_space<vmem>>, vector<18x128xbf16>
    %c0_1 = arith.constant 0 : index
    %c0_2 = arith.constant 0 : index
    %1 = vector.load %arg2[%c0_1, %c0_2] : memref<32x18xbf16, #tpu.memory_space<vmem>>, vector<32x18xbf16>
    %cst = arith.constant dense<0.000000e+00> : vector<32x128xf32>
    %2 = tpu.matmul %1, %0, %cst {dimension_numbers = #tpu.dot_dimension_numbers<[1], [0], [0], [1], [0, 0, 1, 1], [], []>} : vector<32x18xbf16>, vector<18x128xbf16>, vector<32x128xf32> -> vector<32x128xf32>
    %c0_3 = arith.constant 0 : index
    %c0_4 = arith.constant 0 : index
    %3 = vector.load %arg3[%c0_3, %c0_4] : memref<32x1xf32, #tpu.memory_space<vmem>>, vector<32x1xf32>
    %4 = vector.broadcast %3 : vector<32x1xf32> to vector<32x128xf32>
    %5 = arith.addf %2, %4 : vector<32x128xf32>
    %cst_5 = arith.constant 0.000000e+00 : f32
    %6 = vector.broadcast %cst_5 : f32 to vector<32x128xf32>
    %7 = arith.maximumf %5, %6 : vector<32x128xf32>
    %c0_6 = arith.constant 0 : index
    %c0_7 = arith.constant 0 : index
    %8 = vector.load %arg4[%c0_6, %c0_7] : memref<32x32xbf16, #tpu.memory_space<vmem>>, vector<32x32xbf16>
    %9 = arith.truncf %7 : vector<32x128xf32> to vector<32x128xbf16>
    %cst_8 = arith.constant dense<0.000000e+00> : vector<32x128xf32>
    %10 = tpu.matmul %8, %9, %cst_8 {dimension_numbers = #tpu.dot_dimension_numbers<[1], [0], [0], [1], [0, 0, 1, 1], [], []>} : vector<32x32xbf16>, vector<32x128xbf16>, vector<32x128xf32> -> vector<32x128xf32>
    %c0_9 = arith.constant 0 : index
    %c0_10 = arith.constant 0 : index
    %11 = vector.load %arg5[%c0_9, %c0_10] : memref<32x1xf32, #tpu.memory_space<vmem>>, vector<32x1xf32>
    %12 = vector.broadcast %11 : vector<32x1xf32> to vector<32x128xf32>
    %13 = arith.addf %10, %12 : vector<32x128xf32>
    %cst_11 = arith.constant 0.000000e+00 : f32
    %14 = vector.broadcast %cst_11 : f32 to vector<32x128xf32>
    %15 = arith.maximumf %13, %14 : vector<32x128xf32>
    %c0_12 = arith.constant 0 : index
    %c0_13 = arith.constant 0 : index
    %16 = vector.load %arg6[%c0_12, %c0_13] : memref<1x32xbf16, #tpu.memory_space<vmem>>, vector<1x32xbf16>
    %17 = arith.truncf %15 : vector<32x128xf32> to vector<32x128xbf16>
    %cst_14 = arith.constant dense<0.000000e+00> : vector<1x128xf32>
    %18 = tpu.matmul %16, %17, %cst_14 {dimension_numbers = #tpu.dot_dimension_numbers<[1], [0], [0], [1], [0, 0, 1, 1], [], []>} : vector<1x32xbf16>, vector<32x128xbf16>, vector<1x128xf32> -> vector<1x128xf32>
    %c0_15 = arith.constant 0 : index
    %c0_16 = arith.constant 0 : index
    %19 = vector.load %arg7[%c0_15, %c0_16] : memref<1x1xf32, #tpu.memory_space<vmem>>, vector<1x1xf32>
    %20 = vector.broadcast %19 : vector<1x1xf32> to vector<1x128xf32>
    %21 = arith.addf %18, %20 : vector<1x128xf32>
    %c0_17 = arith.constant 0 : index
    %c0_18 = arith.constant 0 : index
    %22 = vector.load %arg8[%c0_17, %c0_18] : memref<1x128xf32, #tpu.memory_space<vmem>>, vector<1x128xf32>
    tpu.vector_store %arg8[%c0_17, %c0_18], %21 {strides = array<i32>} : memref<1x128xf32, #tpu.memory_space<vmem>>, vector<1x128xf32>,
    return
  }
  func.func @transform_0(%arg0: i32) -> (i32, i32) {
    %c0_i32 = arith.constant 0 : i32
    %c0_i32_0 = arith.constant 0 : i32
    return %c0_i32, %arg0 : i32, i32
  }
  func.func @transform_1(%arg0: i32) -> (i32, i32) {
    %c0_i32 = arith.constant 0 : i32
    %c0_i32_0 = arith.constant 0 : i32
    %c0_i32_1 = arith.constant 0 : i32
    return %c0_i32, %c0_i32_0 : i32, i32
  }
  func.func @transform_2(%arg0: i32) -> (i32, i32) {
    %c0_i32 = arith.constant 0 : i32
    %c0_i32_0 = arith.constant 0 : i32
    %c0_i32_1 = arith.constant 0 : i32
    return %c0_i32, %c0_i32_0 : i32, i32
  }
  func.func @transform_3(%arg0: i32) -> (i32, i32) {
    %c0_i32 = arith.constant 0 : i32
    %c0_i32_0 = arith.constant 0 : i32
    %c0_i32_1 = arith.constant 0 : i32
    return %c0_i32, %c0_i32_0 : i32, i32
  }
  func.func @transform_4(%arg0: i32) -> (i32, i32) {
    %c0_i32 = arith.constant 0 : i32
    %c0_i32_0 = arith.constant 0 : i32
    %c0_i32_1 = arith.constant 0 : i32
    return %c0_i32, %c0_i32_0 : i32, i32
  }
  func.func @transform_5(%arg0: i32) -> (i32, i32) {
    %c0_i32 = arith.constant 0 : i32
    %c0_i32_0 = arith.constant 0 : i32
    %c0_i32_1 = arith.constant 0 : i32
    return %c0_i32, %c0_i32_0 : i32, i32
  }
  func.func @transform_6(%arg0: i32) -> (i32, i32) {
    %c0_i32 = arith.constant 0 : i32
    %c0_i32_0 = arith.constant 0 : i32
    %c0_i32_1 = arith.constant 0 : i32
    return %c0_i32, %c0_i32_0 : i32, i32
  }
  func.func @transform_7(%arg0: i32) -> (i32, i32) {
    %c0_i32 = arith.constant 0 : i32
    %c0_i32_0 = arith.constant 0 : i32
    return %c0_i32, %arg0 : i32, i32
  }
}

</mosaic_0001>

<llo_original>
// kernel: netopt_forward.1
$region0: #{netopt_forward.1}
  #allocation0 [shape = 'u32[]', space=smem, size = 0x4, offset = 0x4, fixed_abs, tag = 'smem constant byte address 0x4 - core index']
  #allocation1 [shape = 'u32[144,128]{1,0:T(1,128)}', space=vmem, size = 0x12000, scoped, tag = 'internal scratch']
  #allocation2 [shape = 'f32[1,1]{1,0:T(1,128)S(1)}', space=vmem, size = 0x200, scoped, tag = 'scoped memory for netopt_forward.1']
  %s0 = inlined_call_operand.vmem [shape: bf16[18,128], index: 0, kind: input, shape index: {}]
  %s1 = inlined_call_operand.vmem [shape: bf16[32,18], index: 1, kind: input, shape index: {}]
  %s2 = inlined_call_operand.vmem [shape: f32[32,1], index: 2, kind: input, shape index: {}]
  %s3 = inlined_call_operand.vmem [shape: bf16[32,32], index: 3, kind: input, shape index: {}]
  %s4 = inlined_call_operand.vmem [shape: f32[32,1], index: 4, kind: input, shape index: {}]
  %s5 = inlined_call_operand.vmem [shape: bf16[1,32], index: 5, kind: input, shape index: {}]
  %s6 = inlined_call_operand.<no memory space> [shape: f32[1,1], index: 6, kind: input, shape index: {}]
  %s7 = inlined_call_operand.vmem [shape: f32[1,128], index: 7, kind: output, shape index: {}]
  %s8 = sld [smem:[#allocation0]]
  $region38: #{netopt_forward.1} parent=0
    _
  %s10 = ssub.s32 1, %s8
  %s11 = scalar_select 0, %s10, %s8
  %v12 = vstv %s6
  %13 = vst [vmem:[#allocation2] sm:$0x1] %v12
  // Predicated region
  $region2: #{netopt_forward.1} parent=0 // pred_check
    _
  $region3: #{netopt_forward.1} parent=0 // pred_check_branch
    %15 = sbr.rel (0) target = $region5
  $region4: #{netopt_forward.1} parent=0 // pred_region
    _
  $region5: #{netopt_forward.1} parent=0 // pred_fallthru
    _
  // Predicated region
  $region6: #{netopt_forward.1} parent=0 // pred_check
    _
  $region7: #{netopt_forward.1} parent=0 // pred_check_branch
    %17 = sbr.rel (0) target = $region9
  $region8: #{netopt_forward.1} parent=0 // pred_region
    _
  $region9: #{netopt_forward.1} parent=0 // pred_fallthru
    _
  // Predicated region
  $region10: #{netopt_forward.1} parent=0 // pred_check
    _
  $region11: #{netopt_forward.1} parent=0 // pred_check_branch
    %19 = sbr.rel (0) target = $region13
  $region12: #{netopt_forward.1} parent=0 // pred_region
    _
  $region13: #{netopt_forward.1} parent=0 // pred_fallthru
    _
  // Predicated region
  $region14: #{netopt_forward.1} parent=0 // pred_check
    _
  $region15: #{netopt_forward.1} parent=0 // pred_check_branch
    %21 = sbr.rel (0) target = $region17
  $region16: #{netopt_forward.1} parent=0 // pred_region
    _
  $region17: #{netopt_forward.1} parent=0 // pred_fallthru
    _
  // Predicated region
  $region18: #{netopt_forward.1} parent=0 // pred_check
    _
  $region19: #{netopt_forward.1} parent=0 // pred_check_branch
    %23 = sbr.rel (0) target = $region21
  $region20: #{netopt_forward.1} parent=0 // pred_region
    _
  $region21: #{netopt_forward.1} parent=0 // pred_fallthru
    _
  // Predicated region
  $region22: #{netopt_forward.1} parent=0 // pred_check
    _
  $region23: #{netopt_forward.1} parent=0 // pred_check_branch
    %25 = sbr.rel (0) target = $region25
  $region24: #{netopt_forward.1} parent=0 // pred_region
    _
  $region25: #{netopt_forward.1} parent=0 // pred_fallthru
    _
  // Predicated region
  $region26: #{netopt_forward.1} parent=0 // pred_check
    _
  $region27: #{netopt_forward.1} parent=0 // pred_check_branch
    %27 = sbr.rel (0) target = $region29
  $region28: #{netopt_forward.1} parent=0 // pred_region
    _
  $region29: #{netopt_forward.1} parent=0 // pred_fallthru
    _
  %v29 = vld [vmem:[%s0] sm:$0xf]
  %v30 = vld [vmem:[%s0 + $0x4] sm:$0xf]
  %v31 = vld [vmem:[%s0 + $0x8] sm:$0x1]
  %v32 = vld [vmem:[%s1] sm:$0xf]
  %v33 = vld [vmem:[%s1 + $0x4] sm:$0xf]
  %v34 = vld [vmem:[%s1 + $0x8] sm:$0xf]
  %v35 = vld [vmem:[%s1 + $0xc] sm:$0xf]
  %v36 = vld [vmem:[%s2] sm:$0xff]
  %v37 = vld [vmem:[%s2 + $0x8] sm:$0xff]
  %v38 = vld [vmem:[%s2 + $0x10] sm:$0xff]
  %v39 = vld [vmem:[%s2 + $0x18] sm:$0xff]
  %41 = vset.pattern.permute.xlu0 0
  %42 = vperm.xlu0 %41, %v36
  %v43 = vpop.permute.xlu0 %42
  %46 = vset.pattern.permute.xlu0 0
  %47 = vperm.xlu0 %46, %v37
  %v48 = vpop.permute.xlu0 %47
  %51 = vset.pattern.permute.xlu0 0
  %52 = vperm.xlu0 %51, %v38
  %v53 = vpop.permute.xlu0 %52
  %56 = vset.pattern.permute.xlu0 0
  %57 = vperm.xlu0 %56, %v39
  %v58 = vpop.permute.xlu0 %57
  %v64 = vunpack.c.l.b16 %v32
  %v65 = vunpack.c.l.b16 %v33
  %v66 = vunpack.c.l.b16 %v34
  %v67 = vunpack.c.l.b16 %v35
  %v68 = vpack.c.b16 %v65, %v64
  %v69 = vpack.c.b16 %v67, %v66
  %v73 = vunpack.c.l.b16 %v29
  %v74 = vunpack.c.l.b16 %v30
  %v75 = vunpack.c.l.b16 %v31
  %v76 = vpack.c.b16 %v74, %v73
  %v77 = vpack.c.b16 %v75, %v75
  %vm79 = vcmask 146432
  %v81 = vsel %vm79, %v68, 0
  %v84 = vsel %vm79, %v69, 0
  %vm86 = vcmask 1040384
  %v88 = vsel %vm86, %v77, 0
  %90 = vmatprep.subr.bf16.mxu0 0
  %91 = vmatpush1.bf16.msra.mxu0 %v76
  %92 = vmatprep.subr.bf16.mxu0 0
  %93 = vmatpush1.bf16.msra.mxu0 %v88
  %94 = vmatprep.subr.bf16.mxu0 0
  %95 = vmatpush1.bf16.msra.mxu0 0
  %96 = vmatprep.subr.bf16.mxu0 0
  %97 = vmatpush1.bf16.msra.mxu0 0
  %98 = vmatprep.subr.bf16.mxu0 0
  %99 = vmatpush1.bf16.msra.mxu0 0
  %100 = vmatprep.subr.bf16.mxu0 0
  %101 = vmatpush1.bf16.msra.mxu0 0
  %102 = vmatprep.subr.bf16.mxu0 0
  %103 = vmatpush1.bf16.msra.mxu0 0
  %104 = vmatprep.subr.bf16.mxu0 0
  %105 = vmatpush1.bf16.msra.mxu0 0
  %106 = vmatprep.subr.bf16.mxu0 0
  %107 = vmatpush1.bf16.msra.mxu0 0
  %108 = vmatprep.subr.bf16.mxu0 0
  %109 = vmatpush1.bf16.msra.mxu0 0
  %110 = vmatprep.subr.bf16.mxu0 0
  %111 = vmatpush1.bf16.msra.mxu0 0
  %112 = vmatprep.subr.bf16.mxu0 0
  %113 = vmatpush1.bf16.msra.mxu0 0
  %114 = vmatprep.subr.bf16.mxu0 0
  %115 = vmatpush1.bf16.msra.mxu0 0
  %116 = vmatprep.subr.bf16.mxu0 0
  %117 = vmatpush1.bf16.msra.mxu0 0
  %118 = vmatprep.subr.bf16.mxu0 0
  %119 = vmatpush1.bf16.msra.mxu0 0
  %120 = vmatprep.subr.bf16.mxu0 0
  %121 = vmatpush1.bf16.msra.mxu0 0
  %122 = vmatprep.mubr.bf16.mxu0 0
  %123 = vmatmul.mubr.bf16.gmra.mrb[0].mxu0 %v81
  %v124 = vpop.f32.mrb[0].mxu0
  %v125 = vadd.f32 %v43, %v124
  %v126 = vpop.f32.mrb[0].mxu0
  %v127 = vpop.f32.mrb[0].mxu0
  %v128 = vadd.f32 %v48, %v127
  %v129 = vpop.f32.mrb[0].mxu0
  %130 = vmatprep.mubr.bf16.mxu0 0
  %131 = vmatmul.mubr.bf16.gmra.mrb[0].mxu0 %v84
  %v132 = vpop.f32.mrb[0].mxu0
  %v133 = vadd.f32 %v53, %v132
  %v134 = vpop.f32.mrb[0].mxu0
  %v135 = vpop.f32.mrb[0].mxu0
  %v136 = vadd.f32 %v58, %v135
  %v137 = vpop.f32.mrb[0].mxu0
  %138 = vdwg.mxu0
  %v139 = vmax.f32 %v125, 0.0
  %v140 = vmax.f32 %v128, 0.0
  %v141 = vmax.f32 %v133, 0.0
  %v142 = vmax.f32 %v136, 0.0
  %v143 = vld [vmem:[%s3] sm:$0xf]
  %v144 = vld [vmem:[%s3 + $0x4] sm:$0xf]
  %v145 = vld [vmem:[%s3 + $0x8] sm:$0xf]
  %v146 = vld [vmem:[%s3 + $0xc] sm:$0xf]
  %v147 = vpack.c.bf16 %v140, %v139
  %v148 = vpack.c.bf16 %v142, %v141
  %v149 = vld [vmem:[%s4] sm:$0xff]
  %v150 = vld [vmem:[%s4 + $0x8] sm:$0xff]
  %v151 = vld [vmem:[%s4 + $0x10] sm:$0xff]
  %v152 = vld [vmem:[%s4 + $0x18] sm:$0xff]
  %154 = vset.pattern.permute.xlu0 0
  %155 = vperm.xlu0 %154, %v149
  %v156 = vpop.permute.xlu0 %155
  %159 = vset.pattern.permute.xlu0 0
  %160 = vperm.xlu0 %159, %v150
  %v161 = vpop.permute.xlu0 %160
  %164 = vset.pattern.permute.xlu0 0
  %165 = vperm.xlu0 %164, %v151
  %v166 = vpop.permute.xlu0 %165
  %169 = vset.pattern.permute.xlu0 0
  %170 = vperm.xlu0 %169, %v152
  %v171 = vpop.permute.xlu0 %170
  %v177 = vunpack.c.l.b16 %v143
  %v178 = vunpack.c.l.b16 %v144
  %v179 = vunpack.c.l.b16 %v145
  %v180 = vunpack.c.l.b16 %v146
  %v181 = vpack.c.b16 %v178, %v177
  %v182 = vpack.c.b16 %v180, %v179
  %vm183 = vcmask 261120
  %v185 = vsel %vm183, %v181, 0
  %v188 = vsel %vm183, %v182, 0
  %190 = vmatprep.subr.bf16.mxu0 0
  %191 = vmatpush1.bf16.msra.mxu0 %v147
  %192 = vmatprep.subr.bf16.mxu0 0
  %193 = vmatpush1.bf16.msra.mxu0 %v148
  %194 = vmatprep.subr.bf16.mxu0 0
  %195 = vmatpush1.bf16.msra.mxu0 0
  %196 = vmatprep.subr.bf16.mxu0 0
  %197 = vmatpush1.bf16.msra.mxu0 0
  %198 = vmatprep.subr.bf16.mxu0 0
  %199 = vmatpush1.bf16.msra.mxu0 0
  %200 = vmatprep.subr.bf16.mxu0 0
  %201 = vmatpush1.bf16.msra.mxu0 0
  %202 = vmatprep.subr.bf16.mxu0 0
  %203 = vmatpush1.bf16.msra.mxu0 0
  %204 = vmatprep.subr.bf16.mxu0 0
  %205 = vmatpush1.bf16.msra.mxu0 0
  %206 = vmatprep.subr.bf16.mxu0 0
  %207 = vmatpush1.bf16.msra.mxu0 0
  %208 = vmatprep.subr.bf16.mxu0 0
  %209 = vmatpush1.bf16.msra.mxu0 0
  %210 = vmatprep.subr.bf16.mxu0 0
  %211 = vmatpush1.bf16.msra.mxu0 0
  %212 = vmatprep.subr.bf16.mxu0 0
  %213 = vmatpush1.bf16.msra.mxu0 0
  %214 = vmatprep.subr.bf16.mxu0 0
  %215 = vmatpush1.bf16.msra.mxu0 0
  %216 = vmatprep.subr.bf16.mxu0 0
  %217 = vmatpush1.bf16.msra.mxu0 0
  %218 = vmatprep.subr.bf16.mxu0 0
  %219 = vmatpush1.bf16.msra.mxu0 0
  %220 = vmatprep.subr.bf16.mxu0 0
  %221 = vmatpush1.bf16.msra.mxu0 0
  %222 = vmatprep.mubr.bf16.mxu0 0
  %223 = vmatmul.mubr.bf16.gmra.mrb[0].mxu0 %v185
  %v224 = vpop.f32.mrb[0].mxu0
  %v225 = vadd.f32 %v156, %v224
  %v226 = vpop.f32.mrb[0].mxu0
  %v227 = vpop.f32.mrb[0].mxu0
  %v228 = vadd.f32 %v161, %v227
  %v229 = vpop.f32.mrb[0].mxu0
  %230 = vmatprep.mubr.bf16.mxu0 0
  %231 = vmatmul.mubr.bf16.gmra.mrb[0].mxu0 %v188
  %v232 = vpop.f32.mrb[0].mxu0
  %v233 = vadd.f32 %v166, %v232
  %v234 = vpop.f32.mrb[0].mxu0
  %v235 = vpop.f32.mrb[0].mxu0
  %v236 = vadd.f32 %v171, %v235
  %v237 = vpop.f32.mrb[0].mxu0
  %238 = vdwg.mxu0
  %v239 = vmax.f32 %v225, 0.0
  %v240 = vmax.f32 %v228, 0.0
  %v241 = vmax.f32 %v233, 0.0
  %v242 = vmax.f32 %v236, 0.0
  %v243 = vld [vmem:[%s5] sm:$0x1]
  %v244 = vpack.c.bf16 %v240, %v239
  %v245 = vpack.c.bf16 %v242, %v241
  %v246 = vld [vmem:[#allocation2] sm:$0x1]
  %248 = vset.pattern.permute.xlu0 0
  %249 = vperm.xlu0 %248, %v246
  %v250 = vpop.permute.xlu0 %249
  %v252 = vlaneseq
  %v253 = vshrl.u32 %v252, 7
  %v254 = vsub.s32 0, %v253
  %v255 = vrot.slane %v250, %v254
  %v257 = vsel %vm183, %v243, 0
  %259 = vmatprep.subr.bf16.mxu0 0
  %260 = vmatpush1.bf16.msra.mxu0 %v244
  %261 = vmatprep.subr.bf16.mxu0 0
  %262 = vmatpush1.bf16.msra.mxu0 %v245
  %263 = vmatprep.subr.bf16.mxu0 0
  %264 = vmatpush1.bf16.msra.mxu0 0
  %265 = vmatprep.subr.bf16.mxu0 0
  %266 = vmatpush1.bf16.msra.mxu0 0
  %267 = vmatprep.subr.bf16.mxu0 0
  %268 = vmatpush1.bf16.msra.mxu0 0
  %269 = vmatprep.subr.bf16.mxu0 0
  %270 = vmatpush1.bf16.msra.mxu0 0
  %271 = vmatprep.subr.bf16.mxu0 0
  %272 = vmatpush1.bf16.msra.mxu0 0
  %273 = vmatprep.subr.bf16.mxu0 0
  %274 = vmatpush1.bf16.msra.mxu0 0
  %275 = vmatprep.subr.bf16.mxu0 0
  %276 = vmatpush1.bf16.msra.mxu0 0
  %277 = vmatprep.subr.bf16.mxu0 0
  %278 = vmatpush1.bf16.msra.mxu0 0
  %279 = vmatprep.subr.bf16.mxu0 0
  %280 = vmatpush1.bf16.msra.mxu0 0
  %281 = vmatprep.subr.bf16.mxu0 0
  %282 = vmatpush1.bf16.msra.mxu0 0
  %283 = vmatprep.subr.bf16.mxu0 0
  %284 = vmatpush1.bf16.msra.mxu0 0
  %285 = vmatprep.subr.bf16.mxu0 0
  %286 = vmatpush1.bf16.msra.mxu0 0
  %287 = vmatprep.subr.bf16.mxu0 0
  %288 = vmatpush1.bf16.msra.mxu0 0
  %289 = vmatprep.subr.bf16.mxu0 0
  %290 = vmatpush1.bf16.msra.mxu0 0
  %291 = vmatprep.mubr.bf16.mxu0 0
  %292 = vmatmul.mubr.bf16.gmra.mrb[0].mxu0 %v257
  %v293 = vpop.f32.mrb[0].mxu0
  %v294 = vadd.f32 %v255, %v293
  %v295 = vpop.f32.mrb[0].mxu0
  %v296 = vpop.f32.mrb[0].mxu0
  %v297 = vpop.f32.mrb[0].mxu0
  %298 = vdwg.mxu0
  %299 = vst [vmem:[%s7] sm:$0x1] %v294
  // Predicated region
  $region30: #{netopt_forward.1} parent=0 // pred_check
    _
  $region31: #{netopt_forward.1} parent=0 // pred_check_branch
    %301 = sbr.rel (0) target = $region33
  $region32: #{netopt_forward.1} parent=0 // pred_region
    _
  $region33: #{netopt_forward.1} parent=0 // pred_fallthru
    _
  // Predicated region
  $region34: #{netopt_forward.1} parent=0 // pred_check
    _
  $region35: #{netopt_forward.1} parent=0 // pred_check_branch
    %303 = sbr.rel (0) target = $region37
  $region36: #{netopt_forward.1} parent=0 // pred_region
    _
  $region37: #{netopt_forward.1} parent=0 // pred_fallthru
    _

</llo_original>
